<compile_context>
chip_gen: v5e
topology: v5e:2x2
jax: 0.10.0
libtpu: 0.0.40
codegen_flags: <defaults>
</compile_context>

<pallas_src>
import jax
import jax.numpy as jnp
from jax.experimental import pallas as pl
from jax.experimental.pallas import tpu as pltpu

HC = 32        # hidden channels (4*HC = 128 -> exactly one vreg lane width)
N_NODES = 8    # demo node count
LN_EPS = 1e-5  # torch nn.LayerNorm default eps


# --------------------------------------------------------------------------
# Fused kernel: gate / scalar branch / vector branch, one tile of node rows.
# Inputs:
#   sv_ref    (tn, 4hc)  packed state slab  [s | vx | vy | vz]
#   wsg_ref   (2hc, 2hc) fused [W_s | W_g]  (y = x @ w + b convention)
#   wv3_ref   (3hc, 3hc) blockdiag(W_v, W_v, W_v)
#   small_ref (4, 3hc)   row0=[b_s|b_g|0], row1=b_v tiled x3, row2=ln_g, row3=ln_b
# Output:
#   out_ref   (tn, 4hc)  packed [s_out | vx_out | vy_out | vz_out]
# --------------------------------------------------------------------------
def gated_equivariant_kernel(sv_ref, wsg_ref, wv3_ref, small_ref, out_ref):
    f32 = jnp.float32
    sv = sv_ref[...].astype(f32)              # upcast once; all math in f32
    hc = sv.shape[-1] // 4

    s = sv[:, :hc]                            # (tn, hc)
    v_all = sv[:, hc:]                        # (tn, 3hc) = [vx | vy | vz]
    vx = v_all[:, :hc]
    vy = v_all[:, hc:2 * hc]
    vz = v_all[:, 2 * hc:]

    small = small_ref[...]                    # (4, 3hc), one tiny load
    bsg = small[0:1, :2 * hc]                 # (1, 2hc)
    bv3 = small[1:2, :]                       # (1, 3hc)
    ln_g = small[2:3, :hc]                    # (1, hc)
    ln_b = small[3:4, :hc]                    # (1, hc)

    # v_norm = ||v||_2 over the 3 spatial components (torch.norm(v, dim=-1)).
    vn = jnp.sqrt(vx * vx + vy * vy + vz * vz)            # (tn, hc)

    # Fused W_s | W_g: one (tn, 2hc) @ (2hc, 2hc) matmul -> [s_lin | gate_pre].
    cat = jnp.concatenate([s, vn], axis=-1)                # (tn, 2hc)
    sg = jnp.dot(cat, wsg_ref[...], preferred_element_type=f32) + bsg
    s_lin = sg[:, :hc]
    gate = jax.nn.sigmoid(sg[:, hc:])                      # sigmoid once, reused

    # LayerNorm + SiLU on the scalar branch, then gated residual.
    mu = jnp.mean(s_lin, axis=-1, keepdims=True)
    centered = s_lin - mu                                  # hoisted, reused
    var = jnp.mean(centered * centered, axis=-1, keepdims=True)
    s_ln = centered * jax.lax.rsqrt(var + LN_EPS) * ln_g + ln_b
    s_act = s_ln * jax.nn.sigmoid(s_ln)                    # SiLU
    s_out = s + gate * s_act

    # Vector branch: lane-space block-diagonal matmul on the packed lanes.
    # [vx|vy|vz] @ blockdiag(Wv,Wv,Wv) = [vx@Wv | vy@Wv | vz@Wv]  (no sublane
    # stacking, no re-pack at the store).
    v_lin = jnp.dot(v_all, wv3_ref[...], preferred_element_type=f32) + bv3
    gate3 = jnp.tile(gate, (1, 3))                         # (tn, 3hc)
    v_out = v_all + gate3 * v_lin

    # Single lane-dense, unmasked full-block (tn, 4hc) store.
    out_ref[...] = jnp.concatenate([s_out, v_out], axis=-1).astype(out_ref.dtype)


# --------------------------------------------------------------------------
# Row-tile selection: big tiles for HBM roofline, >=2 grid steps once N grows
# (so "parallel" shards across v7x's two TensorCores), multiple-of-32 rows so
# the (8,128)/(16,128)/(32,128) layout constraints hold for f32/bf16/int8.
# --------------------------------------------------------------------------
def _pick_tile(n, max_tile=1024):
    if n <= max_tile:
        return n                       # full-array block is always legal
    best = None
    t = 32
    while t <= max_tile:
        if n % t == 0:
            best = t
        t += 32
    return best if best is not None else n


# --------------------------------------------------------------------------
# Fast path: operates on the persistent packed (N, 4hc) slab (no pack/unpack).
# --------------------------------------------------------------------------
def gated_equivariant_block_packed(sv, params, *, tile_n=None):
    n, width = sv.shape
    hc = width // 4
    assert width == 4 * hc and (4 * hc) % 128 == 0, "slab must be lane-dense"
    tn = _pick_tile(n) if tile_n is None else tile_n
    assert n % tn == 0, "node count must be divisible by the row tile"
    assert tn == n or tn % 8 == 0, "row tile must be a multiple of 8"

    return pl.pallas_call(
        gated_equivariant_kernel,
        out_shape=jax.ShapeDtypeStruct((n, 4 * hc), sv.dtype),
        grid_spec=pltpu.PrefetchScalarGridSpec(
            num_scalar_prefetch=0,
            grid=(n // tn,),
            in_specs=[
                pl.BlockSpec((tn, 4 * hc), lambda i: (i, 0)),        # state slab
                pl.BlockSpec((2 * hc, 2 * hc), lambda i: (0, 0)),    # [W_s | W_g]
                pl.BlockSpec((3 * hc, 3 * hc), lambda i: (0, 0)),    # blockdiag W_v
                pl.BlockSpec((4, 3 * hc), lambda i: (0, 0)),         # small params
            ],
            out_specs=pl.BlockSpec((tn, 4 * hc), lambda i: (i, 0)),
        ),
        compiler_params=pltpu.CompilerParams(
            dimension_semantics=("parallel",)),
    )(sv, params['wsg'], params['wv3'], params['small'])


# --------------------------------------------------------------------------
# Compat wrapper with the (s, v) interface of the PyTorch module.
# NOTE: the pack/unpack below is an extra HBM round trip in plain XLA; when
# chaining blocks, keep the packed slab as the persistent layout and call
# gated_equivariant_block_packed directly.
# --------------------------------------------------------------------------
def gated_equivariant_block(s, v, params, *, tile_n=None, io_dtype=jnp.float32):
    n, hc = s.shape
    assert v.shape == (n, hc, 3)
    sv = jnp.concatenate(
        [s, v[..., 0], v[..., 1], v[..., 2]], axis=-1).astype(io_dtype)
    out = gated_equivariant_block_packed(sv, params, tile_n=tile_n)
    out = out.astype(jnp.float32)
    s_out = out[:, :hc]
    v_out = jnp.stack(
        [out[:, hc:2 * hc], out[:, 2 * hc:3 * hc], out[:, 3 * hc:]], axis=-1)
    return s_out, v_out


# --------------------------------------------------------------------------
# Parameters.  Raw (per-layer) params mirror the torch module; pack_params
# derives the fused/packed kernel-side layout.  Linear weights are stored
# pre-transposed: y = x @ w + b with w of shape (in, out).
# --------------------------------------------------------------------------
def init_params(key, hc):
    k_s, k_g, k_v = jax.random.split(key, 3)

    def lin(k, din, dout):
        kw, kb = jax.random.split(k)
        bound = float(din) ** -0.5
        w = jax.random.uniform(kw, (din, dout), jnp.float32, -bound, bound)
        b = jax.random.uniform(kb, (1, dout), jnp.float32, -bound, bound)
        return w, b

    ws, bs = lin(k_s, 2 * hc, hc)      # W_s
    wg, bg = lin(k_g, 2 * hc, hc)      # W_g
    wv, bv = lin(k_v, hc, hc)          # W_v (bias kept: nn.Linear default)
    return {
        'ws': ws, 'bs': bs, 'wg': wg, 'bg': bg, 'wv': wv, 'bv': bv,
        'ln_g': jnp.ones((1, hc), jnp.float32),   # LayerNorm affine defaults
        'ln_b': jnp.zeros((1, hc), jnp.float32),
    }


def _block_diag3(w):
    hc = w.shape[0]
    z = jnp.zeros((hc, hc), w.dtype)
    return jnp.concatenate([
        jnp.concatenate([w, z, z], axis=1),
        jnp.concatenate([z, w, z], axis=1),
        jnp.concatenate([z, z, w], axis=1)], axis=0)


def pack_params(raw):
    hc = raw['wv'].shape[0]
    wsg = jnp.concatenate([raw['ws'], raw['wg']], axis=1)      # (2hc, 2hc)
    wv3 = _block_diag3(raw['wv'])                               # (3hc, 3hc)
    small = jnp.zeros((4, 3 * hc), jnp.float32)
    small = small.at[0, :2 * hc].set(
        jnp.concatenate([raw['bs'], raw['bg']], axis=1)[0])     # [b_s | b_g]
    small = small.at[1, :].set(jnp.tile(raw['bv'], (1, 3))[0])  # b_v x3
    small = small.at[2, :hc].set(raw['ln_g'][0])
    small = small.at[3, :hc].set(raw['ln_b'][0])
    return {'wsg': wsg, 'wv3': wv3, 'small': small}


# --------------------------------------------------------------------------
# Pure-JAX reference (direct mirror of the torch forward) for correctness.
# --------------------------------------------------------------------------
def reference_forward(s, v, raw):
    hc = s.shape[-1]
    vn = jnp.sqrt(jnp.sum(v * v, axis=-1))                     # (N, hc)
    cat = jnp.concatenate([s, vn], axis=-1)                    # (N, 2hc)
    gate = jax.nn.sigmoid(cat @ raw['wg'] + raw['bg'])
    s_lin = cat @ raw['ws'] + raw['bs']
    mu = jnp.mean(s_lin, axis=-1, keepdims=True)
    var = jnp.mean((s_lin - mu) ** 2, axis=-1, keepdims=True)
    s_ln = (s_lin - mu) * jax.lax.rsqrt(var + LN_EPS) * raw['ln_g'] + raw['ln_b']
    s_out = s + gate * (s_ln * jax.nn.sigmoid(s_ln))
    # W_v(v.transpose(1,2)).transpose(1,2)
    v_lin = jnp.einsum('nhc,hk->nkc', v, raw['wv'],
                       preferred_element_type=jnp.float32)
    v_lin = v_lin + raw['bv'].reshape(1, hc, 1)
    v_out = v + gate[..., None] * v_lin
    return s_out, v_out


if __name__ == "__main__":
    key = jax.random.PRNGKey(0)
    k_p, k_s, k_v = jax.random.split(key, 3)

    raw = init_params(k_p, HC)
    params = pack_params(raw)
    s = jax.random.normal(k_s, (N_NODES, HC), jnp.float32)
    v = jax.random.normal(k_v, (N_NODES, HC, 3), jnp.float32)

    s_ref, v_ref = reference_forward(s, v, raw)

    # f32 I/O path
    s_out, v_out = gated_equivariant_block(s, v, params)
    s_out, v_out = jax.block_until_ready((s_out, v_out))
    assert s_out.shape == (N_NODES, HC)
    assert v_out.shape == (N_NODES, HC, 3)
    assert bool(jnp.all(jnp.isfinite(s_out))) and bool(jnp.all(jnp.isfinite(v_out)))
    assert bool(jnp.allclose(s_out, s_ref, atol=1e-3, rtol=1e-3))
    assert bool(jnp.allclose(v_out, v_ref, atol=1e-3, rtol=1e-3))

    # bf16 I/O path (memory-bound roofline win on v6e/v7x; math stays f32)
    s_bf, v_bf = gated_equivariant_block(s, v, params, io_dtype=jnp.bfloat16)
    s_bf, v_bf = jax.block_until_ready((s_bf, v_bf))
    assert bool(jnp.all(jnp.isfinite(s_bf))) and bool(jnp.all(jnp.isfinite(v_bf)))
    assert bool(jnp.allclose(s_bf, s_ref, atol=1e-1, rtol=1e-1))
    assert bool(jnp.allclose(v_bf, v_ref, atol=1e-1, rtol=1e-1))

    print("KERNEL_OK")
</pallas_src>

<mosaic_0001>
module attributes {stable_mosaic.version = 11 : i64} {
  func.func @gated_equivariant_kernel(%arg0: i32, %arg1: memref<8x128xf32, #tpu.memory_space<vmem>>, %arg2: memref<64x64xf32, #tpu.memory_space<vmem>>, %arg3: memref<96x96xf32, #tpu.memory_space<vmem>>, %arg4: memref<4x96xf32, #tpu.memory_space<vmem>>, %arg5: memref<8x128xf32, #tpu.memory_space<vmem>>) attributes {dimension_semantics = [#tpu.dimension_semantics<parallel>], iteration_bounds = array<i64: 1>, scalar_prefetch = 0 : i64, scratch_operands = 0 : i64, tpu.core_type = #tpu.core_type<tc>, window_params = [{transform_indices = @transform_0, window_bounds = array<i64: 8, 128>}, {pipeline_mode = #tpu.pipeline_mode<synchronous>, transform_indices = @transform_1, window_bounds = array<i64: 64, 64>}, {pipeline_mode = #tpu.pipeline_mode<synchronous>, transform_indices = @transform_2, window_bounds = array<i64: 96, 96>}, {pipeline_mode = #tpu.pipeline_mode<synchronous>, transform_indices = @transform_3, window_bounds = array<i64: 4, 96>}, {transform_indices = @transform_4, window_bounds = array<i64: 8, 128>}]} {
    %c0 = arith.constant 0 : index
    %c0_0 = arith.constant 0 : index
    %0 = vector.load %arg1[%c0, %c0_0] : memref<8x128xf32, #tpu.memory_space<vmem>>, vector<8x128xf32>
    %1 = vector.extract_strided_slice %0 {offsets = [0, 0], sizes = [8, 32], strides = [1, 1]} : vector<8x128xf32> to vector<8x32xf32>
    %2 = vector.extract_strided_slice %0 {offsets = [0, 32], sizes = [8, 96], strides = [1, 1]} : vector<8x128xf32> to vector<8x96xf32>
    %3 = vector.extract_strided_slice %2 {offsets = [0, 0], sizes = [8, 32], strides = [1, 1]} : vector<8x96xf32> to vector<8x32xf32>
    %4 = vector.extract_strided_slice %2 {offsets = [0, 32], sizes = [8, 32], strides = [1, 1]} : vector<8x96xf32> to vector<8x32xf32>
    %5 = vector.extract_strided_slice %2 {offsets = [0, 64], sizes = [8, 32], strides = [1, 1]} : vector<8x96xf32> to vector<8x32xf32>
    %c0_1 = arith.constant 0 : index
    %c0_2 = arith.constant 0 : index
    %6 = vector.load %arg4[%c0_1, %c0_2] : memref<4x96xf32, #tpu.memory_space<vmem>>, vector<4x96xf32>
    %7 = vector.extract_strided_slice %6 {offsets = [0, 0], sizes = [1, 64], strides = [1, 1]} : vector<4x96xf32> to vector<1x64xf32>
    %8 = vector.extract_strided_slice %6 {offsets = [1, 0], sizes = [1, 96], strides = [1, 1]} : vector<4x96xf32> to vector<1x96xf32>
    %9 = vector.extract_strided_slice %6 {offsets = [2, 0], sizes = [1, 32], strides = [1, 1]} : vector<4x96xf32> to vector<1x32xf32>
    %10 = vector.extract_strided_slice %6 {offsets = [3, 0], sizes = [1, 32], strides = [1, 1]} : vector<4x96xf32> to vector<1x32xf32>
    %11 = arith.mulf %3, %3 : vector<8x32xf32>
    %12 = arith.mulf %4, %4 : vector<8x32xf32>
    %13 = arith.addf %11, %12 : vector<8x32xf32>
    %14 = arith.mulf %5, %5 : vector<8x32xf32>
    %15 = arith.addf %13, %14 : vector<8x32xf32>
    %16 = math.sqrt %15 : vector<8x32xf32>
    %17 = tpu.concatenate %1, %16 in 1 : vector<8x32xf32>, vector<8x32xf32> -> vector<8x64xf32>
    %c0_3 = arith.constant 0 : index
    %c0_4 = arith.constant 0 : index
    %18 = vector.load %arg2[%c0_3, %c0_4] : memref<64x64xf32, #tpu.memory_space<vmem>>, vector<64x64xf32>
    %cst = arith.constant dense<0.000000e+00> : vector<8x64xf32>
    %19 = tpu.matmul %17, %18, %cst {dimension_numbers = #tpu.dot_dimension_numbers<[1], [0], [0], [1], [0, 0, 1, 1], [], []>} : vector<8x64xf32>, vector<64x64xf32>, vector<8x64xf32> -> vector<8x64xf32>
    %20 = vector.broadcast %7 : vector<1x64xf32> to vector<8x64xf32>
    %21 = arith.addf %19, %20 : vector<8x64xf32>
    %22 = vector.extract_strided_slice %21 {offsets = [0, 0], sizes = [8, 32], strides = [1, 1]} : vector<8x64xf32> to vector<8x32xf32>
    %23 = vector.extract_strided_slice %21 {offsets = [0, 32], sizes = [8, 32], strides = [1, 1]} : vector<8x64xf32> to vector<8x32xf32>
    %24 = arith.negf %23 : vector<8x32xf32>
    %25 = math.exp %24 : vector<8x32xf32>
    %cst_5 = arith.constant 1.000000e+00 : f32
    %26 = vector.broadcast %cst_5 : f32 to vector<8x32xf32>
    %27 = arith.addf %26, %25 : vector<8x32xf32>
    %28 = arith.divf %26, %27 : vector<8x32xf32>
    %cst_6 = arith.constant dense<0.000000e+00> : vector<8xf32>
    %29 = vector.multi_reduction <add>, %22, %cst_6 [1] : vector<8x32xf32> to vector<8xf32>
    %30 = vector.shape_cast %29 : vector<8xf32> to vector<8x1xf32>
    %cst_7 = arith.constant 3.200000e+01 : f32
    %31 = vector.broadcast %cst_7 : f32 to vector<8x1xf32>
    %32 = arith.divf %30, %31 : vector<8x1xf32>
    %33 = vector.broadcast %32 : vector<8x1xf32> to vector<8x32xf32>
    %34 = arith.subf %22, %33 : vector<8x32xf32>
    %35 = arith.mulf %34, %34 : vector<8x32xf32>
    %cst_8 = arith.constant dense<0.000000e+00> : vector<8xf32>
    %36 = vector.multi_reduction <add>, %35, %cst_8 [1] : vector<8x32xf32> to vector<8xf32>
    %37 = vector.shape_cast %36 : vector<8xf32> to vector<8x1xf32>
    %cst_9 = arith.constant 3.200000e+01 : f32
    %38 = vector.broadcast %cst_9 : f32 to vector<8x1xf32>
    %39 = arith.divf %37, %38 : vector<8x1xf32>
    %cst_10 = arith.constant 9.99999974E-6 : f32
    %40 = vector.broadcast %cst_10 : f32 to vector<8x1xf32>
    %41 = arith.addf %39, %40 : vector<8x1xf32>
    %42 = math.rsqrt %41 : vector<8x1xf32>
    %43 = vector.broadcast %42 : vector<8x1xf32> to vector<8x32xf32>
    %44 = arith.mulf %34, %43 : vector<8x32xf32>
    %45 = vector.broadcast %9 : vector<1x32xf32> to vector<8x32xf32>
    %46 = arith.mulf %44, %45 : vector<8x32xf32>
    %47 = vector.broadcast %10 : vector<1x32xf32> to vector<8x32xf32>
    %48 = arith.addf %46, %47 : vector<8x32xf32>
    %49 = arith.negf %48 : vector<8x32xf32>
    %50 = math.exp %49 : vector<8x32xf32>
    %cst_11 = arith.constant 1.000000e+00 : f32
    %51 = vector.broadcast %cst_11 : f32 to vector<8x32xf32>
    %52 = arith.addf %51, %50 : vector<8x32xf32>
    %53 = arith.divf %51, %52 : vector<8x32xf32>
    %54 = arith.mulf %48, %53 : vector<8x32xf32>
    %55 = arith.mulf %28, %54 : vector<8x32xf32>
    %56 = arith.addf %1, %55 : vector<8x32xf32>
    %c0_12 = arith.constant 0 : index
    %c0_13 = arith.constant 0 : index
    %57 = vector.load %arg3[%c0_12, %c0_13] : memref<96x96xf32, #tpu.memory_space<vmem>>, vector<96x96xf32>
    %cst_14 = arith.constant dense<0.000000e+00> : vector<8x96xf32>
    %58 = tpu.matmul %2, %57, %cst_14 {dimension_numbers = #tpu.dot_dimension_numbers<[1], [0], [0], [1], [0, 0, 1, 1], [], []>} : vector<8x96xf32>, vector<96x96xf32>, vector<8x96xf32> -> vector<8x96xf32>
    %59 = vector.broadcast %8 : vector<1x96xf32> to vector<8x96xf32>
    %60 = arith.addf %58, %59 : vector<8x96xf32>
    %61 = tpu.concatenate %28, %28, %28 in 1 : vector<8x32xf32>, vector<8x32xf32>, vector<8x32xf32> -> vector<8x96xf32>
    %62 = arith.mulf %61, %60 : vector<8x96xf32>
    %63 = arith.addf %2, %62 : vector<8x96xf32>
    %64 = tpu.concatenate %56, %63 in 1 : vector<8x32xf32>, vector<8x96xf32> -> vector<8x128xf32>
    %c0_15 = arith.constant 0 : index
    %c0_16 = arith.constant 0 : index
    %65 = vector.load %arg5[%c0_15, %c0_16] : memref<8x128xf32, #tpu.memory_space<vmem>>, vector<8x128xf32>
    tpu.vector_store %arg5[%c0_15, %c0_16], %64 {strides = array<i32>} : memref<8x128xf32, #tpu.memory_space<vmem>>, vector<8x128xf32>,
    return
  }
  func.func @transform_0(%arg0: i32) -> (i32, i32) {
    %c0_i32 = arith.constant 0 : i32
    %c0_i32_0 = arith.constant 0 : i32
    return %arg0, %c0_i32 : i32, i32
  }
  func.func @transform_1(%arg0: i32) -> (i32, i32) {
    %c0_i32 = arith.constant 0 : i32
    %c0_i32_0 = arith.constant 0 : i32
    %c0_i32_1 = arith.constant 0 : i32
    return %c0_i32, %c0_i32_0 : i32, i32
  }
  func.func @transform_2(%arg0: i32) -> (i32, i32) {
    %c0_i32 = arith.constant 0 : i32
    %c0_i32_0 = arith.constant 0 : i32
    %c0_i32_1 = arith.constant 0 : i32
    return %c0_i32, %c0_i32_0 : i32, i32
  }
  func.func @transform_3(%arg0: i32) -> (i32, i32) {
    %c0_i32 = arith.constant 0 : i32
    %c0_i32_0 = arith.constant 0 : i32
    %c0_i32_1 = arith.constant 0 : i32
    return %c0_i32, %c0_i32_0 : i32, i32
  }
  func.func @transform_4(%arg0: i32) -> (i32, i32) {
    %c0_i32 = arith.constant 0 : i32
    %c0_i32_0 = arith.constant 0 : i32
    return %arg0, %c0_i32 : i32, i32
  }
}

</mosaic_0001>

<llo_original>
// kernel: tpu_custom_call.1
$region0: #{tpu_custom_call.1}
  #allocation0 [shape = 'u32[]', space=smem, size = 0x4, offset = 0x4, fixed_abs, tag = 'smem constant byte address 0x4 - core index']
  #allocation1 [shape = 'u32[72,128]{1,0:T(1,128)}', space=vmem, size = 0x9000, scoped, tag = 'internal scratch']
  %s0 = inlined_call_operand.hbm [shape: f32[8,128], index: 0, kind: input, shape index: {}]
  %s1 = inlined_call_operand.hbm [shape: f32[64,64], index: 1, kind: input, shape index: {}]
  %s2 = inlined_call_operand.hbm [shape: f32[96,96], index: 2, kind: input, shape index: {}]
  %s3 = inlined_call_operand.hbm [shape: f32[4,96], index: 3, kind: input, shape index: {}]
  %s4 = inlined_call_operand.hbm [shape: f32[8,128], index: 4, kind: output, shape index: {}]
  %s5 = sld [smem:[#allocation0]]
  $region42: #{tpu_custom_call.1} parent=0
    _
  %s7 = ssub.s32 1, %s5
  %s8 = scalar_select 0, %s7, %s5
  $region1: #{tpu_custom_call.1} parent=0
    #allocation2 [shape = 'u8[4096]{0}', space=vmem, size = 0x1000, scoped, tag = 'input window, operand 0, single buffered']
    #allocation3 [shape = 's32[1]{0}', space=sflag, size = 0x4, scoped, tag = 'scoped memory for tpu_custom_call.1']
    #allocation4 [shape = 's32[1]{0}', space=sflag, size = 0x4, scoped, tag = 'scoped memory for tpu_custom_call.1']
    #allocation5 [shape = 'u8[32768]{0}', space=vmem, size = 0x8000, scoped, tag = 'input window, operand 1, single buffered']
    #allocation6 [shape = 's32[1]{0}', space=sflag, size = 0x4, scoped, tag = 'scoped memory for tpu_custom_call.1']
    #allocation7 [shape = 'u8[49152]{0}', space=vmem, size = 0xc000, scoped, tag = 'input window, operand 2, single buffered']
    #allocation8 [shape = 'u8[2048]{0}', space=vmem, size = 0x800, scoped, tag = 'input window, operand 3, single buffered']
    #allocation9 [shape = 's32[1]{0}', space=sflag, size = 0x4, scoped, tag = 'scoped memory for tpu_custom_call.1']
    #allocation10 [shape = 'u8[4096]{0}', space=vmem, size = 0x1000, scoped, tag = 'output window, operand 0, single buffered']
    %9 = vsyncpa [#allocation3], 0
    %10 = vsyncpa [#allocation6], 0
    %11 = vsyncpa [#allocation9], 0
    %12 = vsyncpa [#allocation4], 0
    // Predicated region
    $region2: #{tpu_custom_call.1} parent=1 // pred_check
      _
    $region3: #{tpu_custom_call.1} parent=1 // pred_check_branch
      %14 = sbr.rel (0) target = $region5
    $region4: #{tpu_custom_call.1} parent=1 // pred_region
      %16 = vsyncadd [#allocation3], 0
      %s18 = sshll.u32 %s0, 4
      %s19 = int_to_ptr.hbm [resolvable:$true] %s18
      %s20 = sshll.u32 [#allocation2], 4
      %s21 = int_to_ptr.vmem [resolvable:$true] %s20
      %23 = dma.hbm_to_vmem [thread:$0]  %s19, 128, %s21, [#allocation3]
    $region5: #{tpu_custom_call.1} parent=1 // pred_fallthru
      _
    // Predicated region
    $region6: #{tpu_custom_call.1} parent=1 // pred_check
      _
    $region7: #{tpu_custom_call.1} parent=1 // pred_check_branch
      %25 = sbr.rel (0) target = $region9
    $region8: #{tpu_custom_call.1} parent=1 // pred_region
      %27 = vsyncadd [#allocation6], 0
      %s28 = sshll.u32 %s1, 4
      %s29 = int_to_ptr.hbm [resolvable:$true] %s28
      %s30 = sshll.u32 [#allocation5], 4
      %s31 = int_to_ptr.vmem [resolvable:$true] %s30
      %36 = dma.hbm_to_vmem [thread:$0]  %s29, 1024, %s31, [#allocation6], 128, 128, 8
    $region9: #{tpu_custom_call.1} parent=1 // pred_fallthru
      _
    // Predicated region
    $region10: #{tpu_custom_call.1} parent=1 // pred_check
      _
    $region11: #{tpu_custom_call.1} parent=1 // pred_check_branch
      %38 = sbr.rel (0) target = $region13
    $region12: #{tpu_custom_call.1} parent=1 // pred_region
      %40 = vsyncadd [#allocation6], 0
      %s41 = sshll.u32 %s2, 4
      %s42 = int_to_ptr.hbm [resolvable:$true] %s41
      %s43 = sshll.u32 [#allocation7], 4
      %s44 = int_to_ptr.vmem [resolvable:$true] %s43
      %49 = dma.hbm_to_vmem [thread:$0]  %s42, 1536, %s44, [#allocation6], 128, 128, 8
    $region13: #{tpu_custom_call.1} parent=1 // pred_fallthru
      _
    // Predicated region
    $region14: #{tpu_custom_call.1} parent=1 // pred_check
      _
    $region15: #{tpu_custom_call.1} parent=1 // pred_check_branch
      %51 = sbr.rel (0) target = $region17
    $region16: #{tpu_custom_call.1} parent=1 // pred_region
      %53 = vsyncadd [#allocation9], 0
      %s55 = sshll.u32 %s3, 4
      %s56 = int_to_ptr.hbm [resolvable:$true] %s55
      %s57 = sshll.u32 [#allocation8], 4
      %s58 = int_to_ptr.vmem [resolvable:$true] %s57
      %60 = dma.hbm_to_vmem [thread:$0]  %s56, 64, %s58, [#allocation9]
    $region17: #{tpu_custom_call.1} parent=1 // pred_fallthru
      _
    // Predicated region
    $region18: #{tpu_custom_call.1} parent=1 // pred_check
      _
    $region19: #{tpu_custom_call.1} parent=1 // pred_check_branch
      %62 = sbr.rel (0) target = $region21
    $region20: #{tpu_custom_call.1} parent=1 // pred_region
      %64 = dma.done [#allocation3], 128
    $region21: #{tpu_custom_call.1} parent=1 // pred_fallthru
      _
    // Predicated region
    $region22: #{tpu_custom_call.1} parent=1 // pred_check
      _
    $region23: #{tpu_custom_call.1} parent=1 // pred_check_branch
      %66 = sbr.rel (0) target = $region25
    $region24: #{tpu_custom_call.1} parent=1 // pred_region
      %68 = dma.done [#allocation6], 1024
    $region25: #{tpu_custom_call.1} parent=1 // pred_fallthru
      _
    // Predicated region
    $region26: #{tpu_custom_call.1} parent=1 // pred_check
      _
    $region27: #{tpu_custom_call.1} parent=1 // pred_check_branch
      %70 = sbr.rel (0) target = $region29
    $region28: #{tpu_custom_call.1} parent=1 // pred_region
      %72 = dma.done [#allocation6], 1536
    $region29: #{tpu_custom_call.1} parent=1 // pred_fallthru
      _
    // Predicated region
    $region30: #{tpu_custom_call.1} parent=1 // pred_check
      _
    $region31: #{tpu_custom_call.1} parent=1 // pred_check_branch
      %74 = sbr.rel (0) target = $region33
    $region32: #{tpu_custom_call.1} parent=1 // pred_region
      %76 = dma.done [#allocation9], 64
    $region33: #{tpu_custom_call.1} parent=1 // pred_fallthru
      _
    %v77 = vld [vmem:[#allocation2] sm:$0xff]
    %v78 = vld [vmem:[#allocation8] sm:$0xf]
    %v79 = vmul.f32 %v77, %v77
    %81 = vrot.lane.b32.xlu0 %v79, 96
    %v82 = vpop.permute.xlu0 %81
    %v84 = vadd.f32 %v79, %v82
    %85 = vrot.lane.b32.xlu0 %v79, 64
    %v86 = vpop.permute.xlu0 %85
    %v88 = vadd.f32 %v84, %v86
    %v89 = vrsqrt.pop %v88
    %v90 = vmul.f32 %v89, %v88
    %v91 = vmul.f32 %v90, %v89
    %v92 = vmul.f32 0.5, %v91
    %v93 = vsub.f32 1.5, %v92
    %v94 = vmul.f32 %v89, %v93
    %v95 = vmul.f32 %v88, %v94
    %vm96 = vcmp.eq.f32.partialorder %v88, inf
    %v97 = vsel %vm96, %v88, %v95
    %vm98 = vcmp.eq.f32.partialorder %v88, 0.0
    %v99 = vand.u32 %v88, 2147483648
    %v100 = vsel %vm98, %v99, %v97
    %vm101 = vcmask 261120
    %v102 = vsel %vm101, %v77, %v100
    %v103 = vld [vmem:[#allocation5] sm:$0xff]
    %v104 = vld [vmem:[#allocation5 + $0x8] sm:$0xff]
    %v105 = vld [vmem:[#allocation5 + $0x10] sm:$0xff]
    %v106 = vld [vmem:[#allocation5 + $0x18] sm:$0xff]
    %v107 = vld [vmem:[#allocation5 + $0x20] sm:$0xff]
    %v108 = vld [vmem:[#allocation5 + $0x28] sm:$0xff]
    %v109 = vld [vmem:[#allocation5 + $0x30] sm:$0xff]
    %v110 = vld [vmem:[#allocation5 + $0x38] sm:$0xff]
    %v111 = vperm.slane %v78, 0
    %vm112 = vcmask 523264
    %v114 = vsel %vm112, %v102, 0
    %116 = vmatpush.msra.mxu0 0.0
    %117 = vmatpush.msra.mxu0 0.0
    %118 = vmatpush.msra.mxu0 0.0
    %119 = vmatpush.msra.mxu0 0.0
    %120 = vmatpush.msra.mxu0 0.0
    %121 = vmatpush.msra.mxu0 0.0
    %122 = vmatpush.msra.mxu0 0.0
    %123 = vmatpush.msra.mxu0 0.0
    %124 = vmatpush.msra.mxu0 %v110
    %125 = vmatpush.msra.mxu0 %v109
    %126 = vmatpush.msra.mxu0 %v108
    %127 = vmatpush.msra.mxu0 %v107
    %128 = vmatpush.msra.mxu0 %v106
    %129 = vmatpush.msra.mxu0 %v105
    %130 = vmatpush.msra.mxu0 %v104
    %131 = vmatpush.msra.mxu0 %v103
    %132 = vmatmul.f32.gmra.mxu0 %v114
    %v133 = vpop.f32.mrf.mxu0
    %v134 = vadd.f32 %v111, %v133
    %135 = vdwg.mxu0
    %v136 = vxor.u32 %v134, 2147483648
    %v137 = vmul.f32 %v136, 1.442695
    %v138 = vpow.pop %v137
    %v139 = vadd.f32 %v138, 1.0
    %v140 = vrcp.pop %v139
    %v141 = vmul.f32 %v139, %v140
    %v142 = vsub.f32 1.0, %v141
    %v143 = vmul.f32 %v140, %v142
    %v144 = vadd.f32 %v140, %v143
    %vm145 = vweird.f32 %v139
    %vm146 = vweird.f32 %v140
    %vm147 = vmor %vm145, %vm146
    %v148 = vsel %vm147, %v140, %v144
    %v149 = vand.u32 2147483647, %v139
    %vm150 = vcmp.eq.f32.partialorder %v149, 8.507059e+37
    %v151 = vand.u32 %v139, 2147483648
    %v152 = vor.u32 1.1754944e-38, %v151
    %v153 = vsel %vm150, %v152, %v148
    %v154 = vmul.f32 1.0, %v153
    %v155 = vsel %vm101, %v134, 0.0
    %156 = vadd.xlane.f32.xlu0 %v155
    %v157 = vpop.xlane.xlu0 %156
    %v158 = vrcp.pop 32.0
    %v159 = vmul.f32 32.0, %v158
    %v160 = vsub.f32 1.0, %v159
    %v161 = vmul.f32 %v158, %v160
    %v162 = vadd.f32 %v158, %v161
    %vm163 = vweird.f32 %v158
    %v164 = vsel %vm163, %v158, %v162
    %v165 = vmul.f32 %v157, %v164
    %v166 = vsub.f32 %v134, %v165
    %v167 = vmul.f32 %v166, %v166
    %v168 = vsel %vm101, %v167, 0.0
    %169 = vadd.xlane.f32.xlu0 %v168
    %v170 = vpop.xlane.xlu0 %169
    %v171 = vmul.f32 %v170, %v164
    %v172 = vadd.f32 %v171, 1e-05
    %v173 = vrsqrt.pop %v172
    %v174 = vmul.f32 %v173, %v172
    %v175 = vmul.f32 %v174, %v173
    %v176 = vmul.f32 0.5, %v175
    %v177 = vsub.f32 1.5, %v176
    %v178 = vmul.f32 %v173, %v177
    %vm179 = vweird.f32 %v172
    %vm180 = vweird.f32 %v173
    %vm181 = vmor %vm179, %vm180
    %v182 = vsel %vm181, %v173, %v178
    %v183 = vmul.f32 %v166, %v182
    %v184 = vperm.slane %v78, 2
    %v185 = vmul.f32 %v183, %v184
    %v186 = vperm.slane %v78, 3
    %v187 = vadd.f32 %v185, %v186
    %v188 = vxor.u32 %v187, 2147483648
    %v189 = vmul.f32 %v188, 1.442695
    %v190 = vpow.pop %v189
    %v191 = vadd.f32 %v190, 1.0
    %v192 = vrcp.pop %v191
    %v193 = vmul.f32 %v191, %v192
    %v194 = vsub.f32 1.0, %v193
    %v195 = vmul.f32 %v192, %v194
    %v196 = vadd.f32 %v192, %v195
    %vm197 = vweird.f32 %v191
    %vm198 = vweird.f32 %v192
    %vm199 = vmor %vm197, %vm198
    %v200 = vsel %vm199, %v192, %v196
    %v201 = vand.u32 2147483647, %v191
    %vm202 = vcmp.eq.f32.partialorder %v201, 8.507059e+37
    %v203 = vand.u32 %v191, 2147483648
    %v204 = vor.u32 1.1754944e-38, %v203
    %v205 = vsel %vm202, %v204, %v200
    %v206 = vmul.f32 1.0, %v205
    %v207 = vmul.f32 %v187, %v206
    %209 = vrot.lane.b32.xlu0 %v207, 32
    %v210 = vpop.permute.xlu0 %209
    %v212 = vmul.f32 %v154, %v210
    %214 = vrot.lane.b32.xlu0 %v212, 96
    %v215 = vpop.permute.xlu0 %214
    %v217 = vadd.f32 %v77, %v215
    %v218 = vld [vmem:[#allocation7] sm:$0xff]
    %v219 = vld [vmem:[#allocation7 + $0x8] sm:$0xff]
    %v220 = vld [vmem:[#allocation7 + $0x10] sm:$0xff]
    %v221 = vld [vmem:[#allocation7 + $0x18] sm:$0xff]
    %v222 = vld [vmem:[#allocation7 + $0x20] sm:$0xff]
    %v223 = vld [vmem:[#allocation7 + $0x28] sm:$0xff]
    %v224 = vld [vmem:[#allocation7 + $0x30] sm:$0xff]
    %v225 = vld [vmem:[#allocation7 + $0x38] sm:$0xff]
    %v226 = vld [vmem:[#allocation7 + $0x40] sm:$0xff]
    %v227 = vld [vmem:[#allocation7 + $0x48] sm:$0xff]
    %v228 = vld [vmem:[#allocation7 + $0x50] sm:$0xff]
    %v229 = vld [vmem:[#allocation7 + $0x58] sm:$0xff]
    %v230 = vperm.slane %v78, 1
    %232 = vrot.lane.b32.xlu0 %v77, 96
    %v233 = vpop.permute.xlu0 %232
    %vm234 = vcmask 785408
    %v235 = vsel %vm234, %v233, 0
    %237 = vmatpush.msra.mxu0 0.0
    %238 = vmatpush.msra.mxu0 0.0
    %239 = vmatpush.msra.mxu0 0.0
    %240 = vmatpush.msra.mxu0 0.0
    %241 = vmatpush.msra.mxu0 %v229
    %242 = vmatpush.msra.mxu0 %v228
    %243 = vmatpush.msra.mxu0 %v227
    %244 = vmatpush.msra.mxu0 %v226
    %245 = vmatpush.msra.mxu0 %v225
    %246 = vmatpush.msra.mxu0 %v224
    %247 = vmatpush.msra.mxu0 %v223
    %248 = vmatpush.msra.mxu0 %v222
    %249 = vmatpush.msra.mxu0 %v221
    %250 = vmatpush.msra.mxu0 %v220
    %251 = vmatpush.msra.mxu0 %v219
    %252 = vmatpush.msra.mxu0 %v218
    %253 = vmatmul.f32.gmra.mxu0 %v235
    %v254 = vpop.f32.mrf.mxu0
    %v255 = vadd.f32 %v230, %v254
    %256 = vdwg.mxu0
    %258 = vrot.lane.b32.xlu0 %v154, 96
    %v259 = vpop.permute.xlu0 %258
    %261 = vrot.lane.b32.xlu0 %v154, 32
    %v262 = vpop.permute.xlu0 %261
    %v264 = vsel %vm101, %v259, %v154
    %v265 = vsel %vm112, %v264, %v262
    %v266 = vmul.f32 %v265, %v255
    %268 = vrot.lane.b32.xlu0 %v266, 32
    %v269 = vpop.permute.xlu0 %268
    %v271 = vadd.f32 %v77, %v269
    %v272 = vsel %vm101, %v217, %v271
    %273 = vst [vmem:[#allocation10] sm:$0xff] %v272
    // Predicated region
    $region34: #{tpu_custom_call.1} parent=1 // pred_check
      _
    $region35: #{tpu_custom_call.1} parent=1 // pred_check_branch
      %275 = sbr.rel (0) target = $region37
    $region36: #{tpu_custom_call.1} parent=1 // pred_region
      %277 = vsyncadd [#allocation4], 0
      %s279 = sshll.u32 [#allocation10], 4
      %s280 = int_to_ptr.vmem [resolvable:$true] %s279
      %s281 = sshll.u32 %s4, 4
      %s282 = int_to_ptr.hbm [resolvable:$true] %s281
      %284 = dma.vmem_to_hbm [thread:$0]  %s280, 128, %s282, [#allocation4]
    $region37: #{tpu_custom_call.1} parent=1 // pred_fallthru
      _
    // Predicated region
    $region38: #{tpu_custom_call.1} parent=1 // pred_check
      _
    $region39: #{tpu_custom_call.1} parent=1 // pred_check_branch
      %286 = sbr.rel (0) target = $region41
    $region40: #{tpu_custom_call.1} parent=1 // pred_region
      %288 = dma.done [#allocation4], 128
    $region41: #{tpu_custom_call.1} parent=1 // pred_fallthru
      _
    %289 = vsyncpa [#allocation3], 1
    %290 = vsyncpa [#allocation6], 1
    %291 = vsyncpa [#allocation9], 1
    %292 = vsyncpa [#allocation4], 1

</llo_original>
